<compile_context>
chip_gen: v7x
topology: tpu7x:2x2x1
jax: 0.10.0
libtpu: 0.0.40
codegen_flags: <defaults>
</compile_context>

<pallas_src>
import functools

import jax
import jax.numpy as jnp
from jax.experimental import pallas as pl
from jax.experimental.pallas import tpu as pltpu


def _triplet_loss_kernel(a_ref, p_ref, n_ref, o_ref, acc_ref, *,
                         margin, batch, tile_b, tiles_per_split):
    c = pl.program_id(0)          # TensorCore split axis ("parallel")
    i = pl.program_id(1)          # batch-tile index within split ("arbitrary")

    @pl.when(i == 0)
    def _():
        acc_ref[...] = jnp.zeros_like(acc_ref)

    a = a_ref[...].astype(jnp.float32)
    p = p_ref[...].astype(jnp.float32)
    n = n_ref[...].astype(jnp.float32)

    d_pos = a - p
    d_neg = a - n
    # Fused feature-axis reduction: sum((a-p)^2 - (a-n)^2) == d_pos - d_neg.
    row = jnp.sum(d_pos * d_pos - d_neg * d_neg, axis=1, keepdims=True)  # (TB,1)
    losses = jnp.maximum(row + jnp.float32(margin), 0.0)

    # Mask rows outside the real batch (partial last tile, and tile slots on
    # the second core that were clamped in the index_map) so padded/garbage
    # rows do not bias the mean (relu(margin) > 0 on zero rows otherwise).
    tile_idx = c * tiles_per_split + i          # unclamped logical tile index
    row_idx = tile_idx * tile_b + jax.lax.broadcasted_iota(
        jnp.int32, (tile_b, 1), 0)
    losses = jnp.where(row_idx < batch, losses, 0.0)

    acc_ref[...] += losses

    @pl.when(i == pl.num_programs(1) - 1)
    def _():
        partial = jnp.sum(acc_ref[...]) / jnp.float32(batch)
        # Write the per-core partial into element [0, 0] of this core's
        # lane-dense (8, 128) output tile, zeros elsewhere.
        r = jax.lax.broadcasted_iota(jnp.int32, o_ref.shape, 0)
        l = jax.lax.broadcasted_iota(jnp.int32, o_ref.shape, 1)
        o_ref[...] = jnp.where((r == 0) & (l == 0), partial, 0.0)


def _choose_tile_b(batch, dim, itemsize, vmem_budget_bytes=16 * 1024 * 1024):
    """Largest batch tile s.t. 3 inputs x 2 pipeline buffers fit the budget."""
    max_tb = max(8, vmem_budget_bytes // (3 * 2 * dim * itemsize))
    tb = min(1024, max_tb)
    tb = max(8, (tb // 8) * 8)
    if batch <= tb:
        return batch          # single tile == full array dims (always legal)
    return tb


def triplet_loss(anchor, positive, negative, margin=1.0, tile_b=None):
    """Pallas TPU implementation of TripletLoss.forward. Returns a scalar."""
    assert anchor.shape == positive.shape == negative.shape
    assert anchor.ndim == 2, "expected (batch, feature_dim) embeddings"
    B, D = anchor.shape

    itemsize = jnp.dtype(anchor.dtype).itemsize
    if tile_b is None:
        tile_b = _choose_tile_b(B, D, itemsize)
    # Sanitize: tile must be a multiple of 8 rows or cover the whole batch.
    tile_b = min(int(tile_b), B)
    if tile_b != B:
        tile_b = min(max(8, (tile_b // 8) * 8), B)

    num_tiles = pl.cdiv(B, tile_b)
    num_splits = 2 if num_tiles >= 2 else 1   # shard tiles over v7x's 2 TCs
    tiles_per_split = pl.cdiv(num_tiles, num_splits)

    def in_map(c, i):
        # Clamp fully out-of-range tile slots onto a valid block; their rows
        # are masked out inside the kernel.
        return (jnp.minimum(c * tiles_per_split + i, num_tiles - 1), 0)

    kernel = functools.partial(
        _triplet_loss_kernel,
        margin=float(margin), batch=B, tile_b=tile_b,
        tiles_per_split=tiles_per_split,
    )

    # Scoped VMEM: 3 inputs x 2 pipeline buffers x (tile_b, D) + small scratch.
    tile_bytes = 3 * 2 * tile_b * D * itemsize
    vmem_limit = min(max(32 * 1024 * 1024, int(tile_bytes * 1.25) + (1 << 20)),
                     64 * 1024 * 1024)

    out = pl.pallas_call(
        kernel,
        out_shape=jax.ShapeDtypeStruct((8 * num_splits, 128), jnp.float32),
        grid_spec=pltpu.PrefetchScalarGridSpec(
            num_scalar_prefetch=0,
            grid=(num_splits, tiles_per_split),
            in_specs=[
                pl.BlockSpec((tile_b, D), in_map),
                pl.BlockSpec((tile_b, D), in_map),
                pl.BlockSpec((tile_b, D), in_map),
            ],
            out_specs=pl.BlockSpec((8, 128), lambda c, i: (c, 0)),
            scratch_shapes=[pltpu.VMEM((tile_b, 1), jnp.float32)],
        ),
        compiler_params=pltpu.CompilerParams(
            dimension_semantics=("parallel", "arbitrary"),
            vmem_limit_bytes=vmem_limit,
        ),
    )(anchor, positive, negative)

    # Each core wrote its partial mean contribution at [0, 0] of its output
    # tile (zeros elsewhere) -> total loss is just the sum.
    return jnp.sum(out)


if __name__ == "__main__":
    key = jax.random.PRNGKey(0)
    ka, kp, kn = jax.random.split(key, 3)
    B, D = 20, 32
    anchor = jax.random.normal(ka, (B, D), dtype=jnp.float32)
    positive = jax.random.normal(kp, (B, D), dtype=jnp.float32)
    negative = jax.random.normal(kn, (B, D), dtype=jnp.float32)

    # Pure-JAX reference (same semantics as the PyTorch module).
    dpos = jnp.sum((anchor - positive) ** 2, axis=1)
    dneg = jnp.sum((anchor - negative) ** 2, axis=1)
    ref = jnp.mean(jnp.maximum(dpos - dneg + 1.0, 0.0))

    # 1) Default path: single tile covers the whole (small) batch.
    loss = triplet_loss(anchor, positive, negative, margin=1.0)
    jax.block_until_ready(loss)
    assert jnp.allclose(loss, ref, rtol=1e-5, atol=1e-5), (loss, ref)

    # 2) Forced small tile: exercises batch tiling, the accumulate/finalize
    #    path, the 2-way TensorCore split and masking of padded rows
    #    (B=20 is not a multiple of the 8-row tile, and 3 tiles split 2 ways
    #    exercises the clamped out-of-range slot).
    loss_tiled = triplet_loss(anchor, positive, negative, margin=1.0, tile_b=8)
    jax.block_until_ready(loss_tiled)
    assert jnp.allclose(loss_tiled, ref, rtol=1e-5, atol=1e-5), (loss_tiled, ref)

    # 3) bf16 inputs (half HBM traffic), f32 accumulation inside the kernel.
    loss_bf16 = triplet_loss(anchor.astype(jnp.bfloat16),
                             positive.astype(jnp.bfloat16),
                             negative.astype(jnp.bfloat16), margin=1.0)
    jax.block_until_ready(loss_bf16)
    assert jnp.allclose(loss_bf16, ref, rtol=5e-2, atol=5e-2), (loss_bf16, ref)

    print("KERNEL_OK")
</pallas_src>

<mosaic_0001>
module attributes {stable_mosaic.version = 11 : i64} {
  func.func @_triplet_loss_kernel(%arg0: i32, %arg1: i32, %arg2: memref<20x32xf32, #tpu.memory_space<vmem>>, %arg3: memref<20x32xf32, #tpu.memory_space<vmem>>, %arg4: memref<20x32xf32, #tpu.memory_space<vmem>>, %arg5: memref<8x128xf32, #tpu.memory_space<vmem>>, %arg6: memref<20x1xf32, #tpu.memory_space<vmem>>) attributes {dimension_semantics = [#tpu.dimension_semantics<parallel>, #tpu.dimension_semantics<arbitrary>], iteration_bounds = array<i64: 1, 1>, scalar_prefetch = 0 : i64, scratch_operands = 1 : i64, tpu.core_type = #tpu.core_type<tc>, window_params = [{transform_indices = @transform_0, window_bounds = array<i64: 20, 32>}, {transform_indices = @transform_1, window_bounds = array<i64: 20, 32>}, {transform_indices = @transform_2, window_bounds = array<i64: 20, 32>}, {transform_indices = @transform_3, window_bounds = array<i64: 8, 128>}]} {
    %c0_i32 = arith.constant 0 : i32
    %0 = arith.cmpi eq, %arg1, %c0_i32 : i32
    %1 = arith.extui %0 : i1 to i32
    %c0_i32_0 = arith.constant 0 : i32
    %2 = arith.cmpi ne, %1, %c0_i32_0 : i32
    scf.if %2 {
      %cst_16 = arith.constant 0.000000e+00 : f32
      %33 = vector.broadcast %cst_16 : f32 to vector<20x1xf32>
      %c0_17 = arith.constant 0 : index
      %c0_18 = arith.constant 0 : index
      %34 = vector.load %arg6[%c0_17, %c0_18] : memref<20x1xf32, #tpu.memory_space<vmem>>, vector<20x1xf32>
      tpu.vector_store %arg6[%c0_17, %c0_18], %33 {strides = array<i32>} : memref<20x1xf32, #tpu.memory_space<vmem>>, vector<20x1xf32>,
    } else {
    }
    %c0 = arith.constant 0 : index
    %c0_1 = arith.constant 0 : index
    %3 = vector.load %arg2[%c0, %c0_1] : memref<20x32xf32, #tpu.memory_space<vmem>>, vector<20x32xf32>
    %c0_2 = arith.constant 0 : index
    %c0_3 = arith.constant 0 : index
    %4 = vector.load %arg3[%c0_2, %c0_3] : memref<20x32xf32, #tpu.memory_space<vmem>>, vector<20x32xf32>
    %c0_4 = arith.constant 0 : index
    %c0_5 = arith.constant 0 : index
    %5 = vector.load %arg4[%c0_4, %c0_5] : memref<20x32xf32, #tpu.memory_space<vmem>>, vector<20x32xf32>
    %6 = arith.subf %3, %4 : vector<20x32xf32>
    %7 = arith.subf %3, %5 : vector<20x32xf32>
    %8 = arith.mulf %6, %6 : vector<20x32xf32>
    %9 = arith.mulf %7, %7 : vector<20x32xf32>
    %10 = arith.subf %8, %9 : vector<20x32xf32>
    %cst = arith.constant dense<0.000000e+00> : vector<20xf32>
    %11 = vector.multi_reduction <add>, %10, %cst [1] : vector<20x32xf32> to vector<20xf32>
    %12 = vector.shape_cast %11 : vector<20xf32> to vector<20x1xf32>
    %cst_6 = arith.constant 1.000000e+00 : f32
    %13 = vector.broadcast %cst_6 : f32 to vector<20x1xf32>
    %14 = arith.addf %12, %13 : vector<20x1xf32>
    %cst_7 = arith.constant 0.000000e+00 : f32
    %15 = vector.broadcast %cst_7 : f32 to vector<20x1xf32>
    %16 = arith.maximumf %14, %15 : vector<20x1xf32>
    %c1_i32 = arith.constant 1 : i32
    %17 = arith.muli %arg0, %c1_i32 : i32
    %18 = arith.addi %17, %arg1 : i32
    %c20_i32 = arith.constant 20 : i32
    %19 = arith.muli %18, %c20_i32 : i32
    %20 = tpu.iota {dimensions = array<i32: 0>} : vector<20x1xi32>
    %21 = vector.broadcast %19 : i32 to vector<20x1xi32>
    %22 = arith.addi %21, %20 : vector<20x1xi32>
    %c20_i32_8 = arith.constant 20 : i32
    %23 = vector.broadcast %c20_i32_8 : i32 to vector<20x1xi32>
    %24 = arith.cmpi slt, %22, %23 : vector<20x1xi32>
    %cst_9 = arith.constant 0.000000e+00 : f32
    %25 = vector.broadcast %cst_9 : f32 to vector<20x1xf32>
    %26 = arith.select %24, %16, %25 : vector<20x1xi1>, vector<20x1xf32>
    %c0_10 = arith.constant 0 : index
    %c0_11 = arith.constant 0 : index
    %27 = vector.load %arg6[%c0_10, %c0_11] : memref<20x1xf32, #tpu.memory_space<vmem>>, vector<20x1xf32>
    %28 = arith.addf %27, %26 : vector<20x1xf32>
    %c0_12 = arith.constant 0 : index
    %c0_13 = arith.constant 0 : index
    %29 = vector.load %arg6[%c0_12, %c0_13] : memref<20x1xf32, #tpu.memory_space<vmem>>, vector<20x1xf32>
    tpu.vector_store %arg6[%c0_12, %c0_13], %28 {strides = array<i32>} : memref<20x1xf32, #tpu.memory_space<vmem>>, vector<20x1xf32>,
    %c0_i32_14 = arith.constant 0 : i32
    %30 = arith.cmpi eq, %arg1, %c0_i32_14 : i32
    %31 = arith.extui %30 : i1 to i32
    %c0_i32_15 = arith.constant 0 : i32
    %32 = arith.cmpi ne, %31, %c0_i32_15 : i32
    scf.if %32 {
      %c0_16 = arith.constant 0 : index
      %c0_17 = arith.constant 0 : index
      %33 = vector.load %arg6[%c0_16, %c0_17] : memref<20x1xf32, #tpu.memory_space<vmem>>, vector<20x1xf32>
      %34 = vector.shape_cast %33 : vector<20x1xf32> to vector<1x20x1xf32>
      %cst_18 = arith.constant dense<0.000000e+00> : vector<1xf32>
      %35 = vector.multi_reduction <add>, %34, %cst_18 [1, 2] : vector<1x20x1xf32> to vector<1xf32>
      %36 = vector.shape_cast %35 : vector<1xf32> to vector<1x1x1xf32>
      %37 = vector.extract %36[0, 0, 0] : f32 from vector<1x1x1xf32>
      %cst_19 = arith.constant 2.000000e+01 : f32
      %38 = arith.divf %37, %cst_19 : f32
      %39 = tpu.iota {dimensions = array<i32: 0>} : vector<8x128xi32>
      %40 = tpu.iota {dimensions = array<i32: 1>} : vector<8x128xi32>
      %c0_i32_20 = arith.constant 0 : i32
      %41 = vector.broadcast %c0_i32_20 : i32 to vector<8x128xi32>
      %42 = arith.cmpi eq, %39, %41 : vector<8x128xi32>
      %c0_i32_21 = arith.constant 0 : i32
      %43 = vector.broadcast %c0_i32_21 : i32 to vector<8x128xi32>
      %44 = arith.cmpi eq, %40, %43 : vector<8x128xi32>
      %45 = arith.andi %42, %44 : vector<8x128xi1>
      %cst_22 = arith.constant 0.000000e+00 : f32
      %46 = vector.broadcast %38 : f32 to vector<8x128xf32>
      %47 = vector.broadcast %cst_22 : f32 to vector<8x128xf32>
      %48 = arith.select %45, %46, %47 : vector<8x128xi1>, vector<8x128xf32>
      %c0_23 = arith.constant 0 : index
      %c0_24 = arith.constant 0 : index
      %49 = vector.load %arg5[%c0_23, %c0_24] : memref<8x128xf32, #tpu.memory_space<vmem>>, vector<8x128xf32>
      tpu.vector_store %arg5[%c0_23, %c0_24], %48 {strides = array<i32>} : memref<8x128xf32, #tpu.memory_space<vmem>>, vector<8x128xf32>,
    } else {
    }
    return
  }
  func.func @transform_0(%arg0: i32, %arg1: i32) -> (i32, i32) {
    %c1_i32 = arith.constant 1 : i32
    %0 = arith.muli %arg0, %c1_i32 : i32
    %1 = arith.addi %0, %arg1 : i32
    %c0_i32 = arith.constant 0 : i32
    %2 = arith.minsi %1, %c0_i32 : i32
    %c0_i32_0 = arith.constant 0 : i32
    %c0_i32_1 = arith.constant 0 : i32
    return %2, %c0_i32_0 : i32, i32
  }
  func.func @transform_1(%arg0: i32, %arg1: i32) -> (i32, i32) {
    %c1_i32 = arith.constant 1 : i32
    %0 = arith.muli %arg0, %c1_i32 : i32
    %1 = arith.addi %0, %arg1 : i32
    %c0_i32 = arith.constant 0 : i32
    %2 = arith.minsi %1, %c0_i32 : i32
    %c0_i32_0 = arith.constant 0 : i32
    %c0_i32_1 = arith.constant 0 : i32
    return %2, %c0_i32_0 : i32, i32
  }
  func.func @transform_2(%arg0: i32, %arg1: i32) -> (i32, i32) {
    %c1_i32 = arith.constant 1 : i32
    %0 = arith.muli %arg0, %c1_i32 : i32
    %1 = arith.addi %0, %arg1 : i32
    %c0_i32 = arith.constant 0 : i32
    %2 = arith.minsi %1, %c0_i32 : i32
    %c0_i32_0 = arith.constant 0 : i32
    %c0_i32_1 = arith.constant 0 : i32
    return %2, %c0_i32_0 : i32, i32
  }
  func.func @transform_3(%arg0: i32, %arg1: i32) -> (i32, i32) {
    %c0_i32 = arith.constant 0 : i32
    %c0_i32_0 = arith.constant 0 : i32
    return %arg0, %c0_i32 : i32, i32
  }
}

</mosaic_0001>

<llo_original>
// kernel: tpu_custom_call.1
$region0: #{tpu_custom_call.1}
  #allocation0 [shape = 'u32[]', space=smem, size = 0x4, offset = 0x4, fixed_abs, tag = 'smem constant byte address 0x4 - core index']
  #allocation1 [shape = 'u32[144,128]{1,0:T(1,128)}', space=vmem, size = 0x12000, scoped, tag = 'internal scratch']
  #allocation2 [shape = 'f32[20,1]{1,0:T(8,128)}', space=vmem, size = 0x3000, scoped, tag = 'scratch operand']
  %s0 = inlined_call_operand.hbm [shape: f32[20,32], index: 0, kind: input, shape index: {}]
  %s1 = inlined_call_operand.hbm [shape: f32[20,32], index: 1, kind: input, shape index: {}]
  %s2 = inlined_call_operand.hbm [shape: f32[20,32], index: 2, kind: input, shape index: {}]
  %s3 = inlined_call_operand.hbm [shape: f32[8,128], index: 3, kind: output, shape index: {}]
  %s4 = sld [smem:[#allocation0]]
  $region42: #{tpu_custom_call.1} parent=0
    _
  %s6 = ssub.s32 1, %s4
  %s7 = scalar_select 0, %s6, %s4
  $region1: #{tpu_custom_call.1} parent=0
    #allocation3 [shape = 'u8[12288]{0}', space=vmem, size = 0x3000, scoped, tag = 'input window, operand 0, single buffered']
    #allocation4 [shape = 's32[1]{0}', space=sflag, size = 0x4, scoped, tag = 'scoped memory for tpu_custom_call.1']
    #allocation5 [shape = 's32[1]{0}', space=sflag, size = 0x4, scoped, tag = 'scoped memory for tpu_custom_call.1']
    #allocation6 [shape = 'u8[12288]{0}', space=vmem, size = 0x3000, scoped, tag = 'input window, operand 1, single buffered']
    #allocation7 [shape = 's32[1]{0}', space=sflag, size = 0x4, scoped, tag = 'scoped memory for tpu_custom_call.1']
    #allocation8 [shape = 'u8[12288]{0}', space=vmem, size = 0x3000, scoped, tag = 'input window, operand 2, single buffered']
    #allocation9 [shape = 'u8[4096]{0}', space=vmem, size = 0x1000, scoped, tag = 'output window, operand 0, single buffered']
    %8 = vsyncpa [#allocation4], 0
    %9 = vsyncpa [#allocation7], 0
    %10 = vsyncpa [#allocation5], 0
    // Predicated region
    $region2: #{tpu_custom_call.1} parent=1 // pred_check
      _
    $region3: #{tpu_custom_call.1} parent=1 // pred_check_branch
      %12 = sbr.rel (0) target = $region5
    $region4: #{tpu_custom_call.1} parent=1 // pred_region
      %s13 = sadd.s32 0, 0
      %p14 = scmp.lt.s32.totalorder %s13, 0
      %s15 = scalar_select %p14, %s13, 0
      %s16 = smul.u32 3, %s15
      %s18 = ssub.s32 384, 384
      %19 = vsyncadd [#allocation4], %s18
      %s20 = smul.addr %s16, 128
      %s21 = scalar_lea.hbm %s0, %s20
      %s22 = sshll.u32 [#allocation3], 4
      %s23 = int_to_ptr.vmem [resolvable:$true] %s22
      %28 = dma.hbm_to_vmem [thread:$0]  %s21, 384, %s23, [#allocation4], 128, 128, 8
    $region5: #{tpu_custom_call.1} parent=1 // pred_fallthru
      _
    // Predicated region
    $region6: #{tpu_custom_call.1} parent=1 // pred_check
      _
    $region7: #{tpu_custom_call.1} parent=1 // pred_check_branch
      %30 = sbr.rel (0) target = $region9
    $region8: #{tpu_custom_call.1} parent=1 // pred_region
      %s31 = sadd.s32 0, 0
      %p32 = scmp.lt.s32.totalorder %s31, 0
      %s33 = scalar_select %p32, %s31, 0
      %s34 = smul.u32 3, %s33
      %s36 = ssub.s32 384, 384
      %37 = vsyncadd [#allocation7], %s36
      %s38 = smul.addr %s34, 128
      %s39 = scalar_lea.hbm %s1, %s38
      %s40 = sshll.u32 [#allocation6], 4
      %s41 = int_to_ptr.vmem [resolvable:$true] %s40
      %46 = dma.hbm_to_vmem [thread:$0]  %s39, 384, %s41, [#allocation7], 128, 128, 8
    $region9: #{tpu_custom_call.1} parent=1 // pred_fallthru
      _
    // Predicated region
    $region10: #{tpu_custom_call.1} parent=1 // pred_check
      _
    $region11: #{tpu_custom_call.1} parent=1 // pred_check_branch
      %48 = sbr.rel (0) target = $region13
    $region12: #{tpu_custom_call.1} parent=1 // pred_region
      %s49 = sadd.s32 0, 0
      %p50 = scmp.lt.s32.totalorder %s49, 0
      %s51 = scalar_select %p50, %s49, 0
      %s52 = smul.u32 3, %s51
      %s54 = ssub.s32 384, 384
      %55 = vsyncadd [#allocation7], %s54
      %s56 = smul.addr %s52, 128
      %s57 = scalar_lea.hbm %s2, %s56
      %s58 = sshll.u32 [#allocation8], 4
      %s59 = int_to_ptr.vmem [resolvable:$true] %s58
      %64 = dma.hbm_to_vmem [thread:$0]  %s57, 384, %s59, [#allocation7], 128, 128, 8
    $region13: #{tpu_custom_call.1} parent=1 // pred_fallthru
      _
    // Predicated region
    $region14: #{tpu_custom_call.1} parent=1 // pred_check
      _
    $region15: #{tpu_custom_call.1} parent=1 // pred_check_branch
      %66 = sbr.rel (0) target = $region17
    $region16: #{tpu_custom_call.1} parent=1 // pred_region
      %67 = dma.done [#allocation4], 384
    $region17: #{tpu_custom_call.1} parent=1 // pred_fallthru
      _
    // Predicated region
    $region18: #{tpu_custom_call.1} parent=1 // pred_check
      _
    $region19: #{tpu_custom_call.1} parent=1 // pred_check_branch
      %69 = sbr.rel (0) target = $region21
    $region20: #{tpu_custom_call.1} parent=1 // pred_region
      %70 = dma.done [#allocation7], 384
    $region21: #{tpu_custom_call.1} parent=1 // pred_fallthru
      _
    // Predicated region
    $region22: #{tpu_custom_call.1} parent=1 // pred_check
      _
    $region23: #{tpu_custom_call.1} parent=1 // pred_check_branch
      %72 = sbr.rel (0) target = $region25
    $region24: #{tpu_custom_call.1} parent=1 // pred_region
      %73 = dma.done [#allocation7], 384
    $region25: #{tpu_custom_call.1} parent=1 // pred_fallthru
      _
    %s74 = sadd.s32 0, 0
    %p75 = scmp.lt.s32.totalorder %s74, 0
    %s76 = scalar_select %p75, %s74, 0
    %s77 = smul.u32 3, %s76
    %s78 = sadd.s32 0, 0
    %p79 = scmp.lt.s32.totalorder %s78, 0
    %s80 = scalar_select %p79, %s78, 0
    %s81 = smul.u32 3, %s80
    %s82 = sadd.s32 0, 0
    %p83 = scmp.lt.s32.totalorder %s82, 0
    %s84 = scalar_select %p83, %s82, 0
    %s85 = smul.u32 3, %s84
    %p86 = scmp.eq.s32.totalorder 0, 0
    // Predicated region
    $region26: #{tpu_custom_call.1} parent=1 // pred_check
      %p87 = pneg %p86
    $region27: #{tpu_custom_call.1} parent=1 // pred_check_branch
      %89 = sbr.rel (%p87) target = $region29
    $region28: #{tpu_custom_call.1} parent=1 // pred_region
      %vm90 = vcmask 7168
      %91 = vst.msk [vmem:[#allocation2] sm:$0xff] %vm90, 0.0
      %92 = vst.msk [vmem:[#allocation2 + $0x8] sm:$0xff] %vm90, 0.0
      %vm93 = vcmask 3072
      %94 = vst.msk [vmem:[#allocation2 + $0x10] sm:$0xf] %vm93, 0.0
    $region29: #{tpu_custom_call.1} parent=1 // pred_fallthru
      _
    %v95 = vld [vmem:[#allocation3] sm:$0xff]
    %v96 = vld [vmem:[#allocation3 + $0x8] sm:$0xff]
    %v97 = vld [vmem:[#allocation3 + $0x10] sm:$0xf]
    %v98 = vld [vmem:[#allocation6] sm:$0xff]
    %v99 = vld [vmem:[#allocation6 + $0x8] sm:$0xff]
    %v100 = vld [vmem:[#allocation6 + $0x10] sm:$0xf]
    %v101 = vld [vmem:[#allocation8] sm:$0xff]
    %v102 = vld [vmem:[#allocation8 + $0x8] sm:$0xff]
    %v103 = vld [vmem:[#allocation8 + $0x10] sm:$0xf]
    %v104 = vsub.f32 %v95, %v98
    %v105 = vsub.f32 %v96, %v99
    %v106 = vsub.f32 %v97, %v100
    %v107 = vsub.f32 %v95, %v101
    %v108 = vsub.f32 %v96, %v102
    %v109 = vsub.f32 %v97, %v103
    %v110 = vmul.f32 %v104, %v104
    %v111 = vmul.f32 %v105, %v105
    %v112 = vmul.f32 %v106, %v106
    %v113 = vmul.f32 %v107, %v107
    %v114 = vmul.f32 %v108, %v108
    %v115 = vmul.f32 %v109, %v109
    %v116 = vsub.f32 %v110, %v113
    %v117 = vsub.f32 %v111, %v114
    %v118 = vsub.f32 %v112, %v115
    %vm119 = vcmask 261120
    %v120 = vsel %vm119, %v116, 0.0
    %121 = vadd.xlane.f32.xlu0 %v120
    %v122 = vpop.xlane.xlu0 %121
    %v123 = vsel %vm119, %v117, 0.0
    %124 = vadd.xlane.f32.xlu0 %v123
    %v125 = vpop.xlane.xlu0 %124
    %vm126 = vcmask 257024
    %v127 = vsel %vm126, %v118, 0.0
    %128 = vadd.xlane.f32.xlu0 %v127
    %v129 = vpop.xlane.xlu0 %128
    %v130 = vadd.f32 %v122, 1.0
    %v131 = vadd.f32 %v125, 1.0
    %v132 = vadd.f32 %v129, 1.0
    %v133 = vmax.f32 %v130, 0.0
    %v134 = vmax.f32 %v131, 0.0
    %v135 = vmax.f32 %v132, 0.0
    %s136 = sadd.s32 0, 0
    %s137 = smul.u32 %s136, 20
    %v138 = vlaneseq
    %v139 = vshrl.u32 %v138, 7
    %v140 = vadd.s32 %v139, 8
    %v141 = vadd.s32 %v139, 16
    %v142 = vstv %s137
    %v143 = vadd.s32 %v142, %v139
    %v144 = vadd.s32 %v142, %v140
    %v145 = vadd.s32 %v142, %v141
    %vm146 = vcmp.lt.s32.totalorder %v143, 20
    %vm147 = vcmp.lt.s32.totalorder %v144, 20
    %vm148 = vcmp.lt.s32.totalorder %v145, 20
    %v149 = vsel %vm146, %v133, 0.0
    %v150 = vsel %vm147, %v134, 0.0
    %v151 = vsel %vm148, %v135, 0.0
    %v152 = vld [vmem:[#allocation2] sm:$0xff]
    %v153 = vld [vmem:[#allocation2 + $0x8] sm:$0xff]
    %v154 = vld [vmem:[#allocation2 + $0x10] sm:$0xf]
    %v155 = vadd.f32 %v152, %v149
    %v156 = vadd.f32 %v153, %v150
    %v157 = vadd.f32 %v154, %v151
    %vm158 = vcmask 7168
    %159 = vst.msk [vmem:[#allocation2] sm:$0xff] %vm158, %v155
    %160 = vst.msk [vmem:[#allocation2 + $0x8] sm:$0xff] %vm158, %v156
    %vm161 = vcmask 3072
    %162 = vst.msk [vmem:[#allocation2 + $0x10] sm:$0xf] %vm161, %v157
    // Predicated region
    $region30: #{tpu_custom_call.1} parent=1 // pred_check
      %p163 = pneg %p86
    $region31: #{tpu_custom_call.1} parent=1 // pred_check_branch
      %165 = sbr.rel (%p163) target = $region33
    $region32: #{tpu_custom_call.1} parent=1 // pred_region
      %v166 = vld [vmem:[#allocation2] sm:$0xff]
      %v167 = vld [vmem:[#allocation2 + $0x8] sm:$0xff]
      %v168 = vld [vmem:[#allocation2 + $0x10] sm:$0xf]
      %v169 = vsel %vm158, %v166, 0.0
      %v170 = vsel %vm158, %v167, 0.0
      %v171 = vadd.f32 %v169, %v170
      %v172 = vsel %vm161, %v168, 0.0
      %v173 = vadd.f32 %v171, %v172
      %174 = vadd.xlane.f32.xlu0 %v173
      %v175 = vpop.xlane.xlu0 %174
      %v176 = vrot.slane %v175, 4
      %v177 = vadd.f32 %v175, %v176
      %v178 = vrot.slane %v177, 2
      %v179 = vadd.f32 %v177, %v178
      %v180 = vrot.slane %v179, 1
      %v181 = vadd.f32 %v179, %v180
      %s182 = vtos %v181
      %v183 = vrcp.pop 20.0
      %s184 = vtos %v183
      %s185 = smul.f32 %s182, %s184
      %v186 = vlaneseq
      %v187 = vand.u32 %v186, 127
      %vm188 = vcmp.eq.s32.totalorder %v139, 0
      %vm189 = vcmp.eq.s32.totalorder %v187, 0
      %vm190 = vmand %vm188, %vm189
      %v191 = vstv %s185
      %v192 = vsel %vm190, %v191, 0.0
      %193 = vst [vmem:[#allocation9] sm:$0xff] %v192
    $region33: #{tpu_custom_call.1} parent=1 // pred_fallthru
      _
    // Predicated region
    $region34: #{tpu_custom_call.1} parent=1 // pred_check
      _
    $region35: #{tpu_custom_call.1} parent=1 // pred_check_branch
      %195 = sbr.rel (0) target = $region37
    $region36: #{tpu_custom_call.1} parent=1 // pred_region
      %s197 = ssub.s32 128, 128
      %198 = vsyncadd [#allocation5], %s197
      %s200 = sshll.u32 [#allocation9], 4
      %s201 = int_to_ptr.vmem [resolvable:$true] %s200
      %203 = dma.vmem_to_hbm [thread:$0]  %s201, 128, %s3, [#allocation5]
    $region37: #{tpu_custom_call.1} parent=1 // pred_fallthru
      _
    // Predicated region
    $region38: #{tpu_custom_call.1} parent=1 // pred_check
      _
    $region39: #{tpu_custom_call.1} parent=1 // pred_check_branch
      %205 = sbr.rel (0) target = $region41
    $region40: #{tpu_custom_call.1} parent=1 // pred_region
      %206 = dma.done [#allocation5], 128
    $region41: #{tpu_custom_call.1} parent=1 // pred_fallthru
      _
    %207 = vsyncpa [#allocation4], 1
    %208 = vsyncpa [#allocation7], 1
    %209 = vsyncpa [#allocation5], 1

</llo_original>
